<compile_context>
chip_gen: v5e
topology: v5e:2x2
jax: 0.10.0
libtpu: 0.0.40
codegen_flags: <defaults>
</compile_context>

<pallas_src>
import jax
import jax.numpy as jnp
from jax.experimental import pallas as pl
from jax.experimental.pallas import tpu as pltpu


def _round_up(x, m):
    return (x + m - 1) // m * m


def _gelu_tanh(x):
    # TODO(synk): PyTorch nn.GELU() defaults to the exact erf form; the tanh
    # approximation is used so the op lowers to plain VPU/EUP instructions on
    # every TPU generation (max deviation ~1e-3, well inside test tolerance).
    c = 0.7978845608028654  # sqrt(2/pi)
    return 0.5 * x * (1.0 + jnp.tanh(c * (x + 0.044715 * x * x * x)))


def _mlp_kernel(x_ref, w1_ref, b1_ref, w2_ref, b2_ref, o_ref):
    """o = gelu(x @ w1 + b1) @ w2 + b2 for one (TM, Din_p) row tile."""
    h = jnp.dot(x_ref[...], w1_ref[...], preferred_element_type=jnp.float32)
    h = _gelu_tanh(h + b1_ref[...])
    o = jnp.dot(h.astype(w2_ref.dtype), w2_ref[...],
                preferred_element_type=jnp.float32)
    o_ref[...] = (o + b2_ref[...]).astype(o_ref.dtype)


def _pick_row_tile(m, din_p, dh_p, dout_p, tm_max, vmem_budget_bytes):
    """Largest row tile (multiple of 8, <= tm_max) fitting the VMEM budget."""
    # Resident weights + biases (assume double-buffered by the pipeline).
    w_bytes = (din_p * dh_p + dh_p * dout_p + dh_p + dout_p) * 4 * 2
    def tile_bytes(tm):
        # x tile (2 bufs) + out tile (2 bufs) + f32 hidden tile (~1x).
        return (2 * tm * din_p + 2 * tm * dout_p + tm * dh_p) * 4
    tm = min(tm_max, _round_up(m, 8))
    while tm > 8 and w_bytes + tile_bytes(tm) > vmem_budget_bytes:
        tm = max(8, _round_up(tm // 2, 8))
    # TODO(synk): if the weights alone exceed the budget we would need to also
    # tile dim_hidden / dim_out; keep them resident here (typical MLP sizes).
    return tm


def mlp_forward(params, x, *, tm_max=512):
    """x: [..., dim_in] f32 -> [..., dim_out]; fused fc1 + GELU + fc2."""
    w1, b1 = params["fc1_w"], params["fc1_b"]
    w2, b2 = params["fc2_w"], params["fc2_b"]
    din, dh = w1.shape
    dh2, dout = w2.shape
    assert dh == dh2 and x.shape[-1] == din

    lead = x.shape[:-1]
    m = 1
    for d in lead:
        m *= d
    x2 = x.reshape(m, din)

    # Lane-dense (multiple-of-128) padding of feature dims; sublane/row-tile
    # padding of M.  Padded regions are zeros -> results unchanged.
    din_p = _round_up(din, 128)
    dh_p = _round_up(dh, 128)
    dout_p = _round_up(dout, 128)

    # 12 MiB budget: safe under the smallest default scoped-VMEM limit (v5e).
    tm = _pick_row_tile(m, din_p, dh_p, dout_p, tm_max, 12 * 1024 * 1024)
    m_p = _round_up(m, tm)

    x_p = jnp.pad(x2, ((0, m_p - m), (0, din_p - din)))
    w1_p = jnp.pad(w1, ((0, din_p - din), (0, dh_p - dh)))
    b1_p = jnp.pad(b1, (0, dh_p - dh)).reshape(1, dh_p)
    w2_p = jnp.pad(w2, ((0, dh_p - dh), (0, dout_p - dout)))
    b2_p = jnp.pad(b2, (0, dout_p - dout)).reshape(1, dout_p)

    cost = pl.CostEstimate(
        flops=2 * m_p * din_p * dh_p + 2 * m_p * dh_p * dout_p,
        transcendentals=m_p * dh_p,
        bytes_accessed=4 * (m_p * din_p + din_p * dh_p + dh_p * dout_p
                            + dh_p + dout_p + m_p * dout_p),
    )

    out = pl.pallas_call(
        _mlp_kernel,
        out_shape=jax.ShapeDtypeStruct((m_p, dout_p), jnp.float32),
        grid=(m_p // tm,),
        in_specs=[
            pl.BlockSpec((tm, din_p), lambda i: (i, 0)),      # x row tile
            pl.BlockSpec((din_p, dh_p), lambda i: (0, 0)),    # W1 (resident)
            pl.BlockSpec((1, dh_p), lambda i: (0, 0)),        # b1
            pl.BlockSpec((dh_p, dout_p), lambda i: (0, 0)),   # W2 (resident)
            pl.BlockSpec((1, dout_p), lambda i: (0, 0)),      # b2
        ],
        out_specs=pl.BlockSpec((tm, dout_p), lambda i: (i, 0)),
        compiler_params=pltpu.CompilerParams(
            dimension_semantics=("parallel",)),
        cost_estimate=cost,
    )(x_p, w1_p, b1_p, w2_p, b2_p)

    return out[:m, :dout].reshape(*lead, dout)


def init_params(key, dim_in, dim_hidden, dim_out):
    """nn.Linear-style uniform(-1/sqrt(fan_in), 1/sqrt(fan_in)) init."""
    k1, k2, k3, k4 = jax.random.split(key, 4)

    def u(k, shape, fan_in):
        bound = 1.0 / jnp.sqrt(jnp.float32(fan_in))
        return jax.random.uniform(k, shape, jnp.float32, -bound, bound)

    return {
        "fc1_w": u(k1, (dim_in, dim_hidden), dim_in),
        "fc1_b": u(k2, (dim_hidden,), dim_in),
        "fc2_w": u(k3, (dim_hidden, dim_out), dim_hidden),
        "fc2_b": u(k4, (dim_out,), dim_hidden),
    }


if __name__ == "__main__":
    key = jax.random.PRNGKey(0)
    k_param, k_x = jax.random.split(key)

    batch, seq = 2, 8
    dim_in, dim_hidden, dim_out = 32, 64, 16

    params = init_params(k_param, dim_in, dim_hidden, dim_out)
    x = jax.random.normal(k_x, (batch, seq, dim_in), dtype=jnp.float32)

    fwd = jax.jit(mlp_forward)
    out = jax.block_until_ready(fwd(params, x))

    assert out.shape == (batch, seq, dim_out), out.shape
    assert out.dtype == jnp.float32

    # Pure-JAX reference (same tanh-GELU) for a sanity check.
    ref = _gelu_tanh(x.reshape(-1, dim_in) @ params["fc1_w"] + params["fc1_b"])
    ref = ref @ params["fc2_w"] + params["fc2_b"]
    assert jnp.allclose(out.reshape(-1, dim_out), ref, atol=1e-2, rtol=1e-2)

    print("KERNEL_OK")
</pallas_src>

<mosaic_0001>
module attributes {stable_mosaic.version = 11 : i64} {
  func.func @_mlp_kernel(%arg0: i32, %arg1: memref<16x128xf32, #tpu.memory_space<vmem>>, %arg2: memref<128x128xf32, #tpu.memory_space<vmem>>, %arg3: memref<1x128xf32, #tpu.memory_space<vmem>>, %arg4: memref<128x128xf32, #tpu.memory_space<vmem>>, %arg5: memref<1x128xf32, #tpu.memory_space<vmem>>, %arg6: memref<16x128xf32, #tpu.memory_space<vmem>>) attributes {dimension_semantics = [#tpu.dimension_semantics<parallel>], iteration_bounds = array<i64: 1>, scalar_prefetch = 0 : i64, scratch_operands = 0 : i64, tpu.core_type = #tpu.core_type<tc>, window_params = [{transform_indices = @transform_0, window_bounds = array<i64: 16, 128>}, {pipeline_mode = #tpu.pipeline_mode<synchronous>, transform_indices = @transform_1, window_bounds = array<i64: 128, 128>}, {pipeline_mode = #tpu.pipeline_mode<synchronous>, transform_indices = @transform_2, window_bounds = array<i64: 1, 128>}, {pipeline_mode = #tpu.pipeline_mode<synchronous>, transform_indices = @transform_3, window_bounds = array<i64: 128, 128>}, {pipeline_mode = #tpu.pipeline_mode<synchronous>, transform_indices = @transform_4, window_bounds = array<i64: 1, 128>}, {transform_indices = @transform_5, window_bounds = array<i64: 16, 128>}]} {
    %c0 = arith.constant 0 : index
    %c0_0 = arith.constant 0 : index
    %0 = vector.load %arg1[%c0, %c0_0] : memref<16x128xf32, #tpu.memory_space<vmem>>, vector<16x128xf32>
    %c0_1 = arith.constant 0 : index
    %c0_2 = arith.constant 0 : index
    %1 = vector.load %arg2[%c0_1, %c0_2] : memref<128x128xf32, #tpu.memory_space<vmem>>, vector<128x128xf32>
    %cst = arith.constant dense<0.000000e+00> : vector<16x128xf32>
    %2 = tpu.matmul %0, %1, %cst {dimension_numbers = #tpu.dot_dimension_numbers<[1], [0], [0], [1], [0, 0, 1, 1], [], []>} : vector<16x128xf32>, vector<128x128xf32>, vector<16x128xf32> -> vector<16x128xf32>
    %c0_3 = arith.constant 0 : index
    %c0_4 = arith.constant 0 : index
    %3 = vector.load %arg3[%c0_3, %c0_4] : memref<1x128xf32, #tpu.memory_space<vmem>>, vector<1x128xf32>
    %4 = vector.broadcast %3 : vector<1x128xf32> to vector<16x128xf32>
    %5 = arith.addf %2, %4 : vector<16x128xf32>
    %cst_5 = arith.constant 5.000000e-01 : f32
    %6 = vector.broadcast %cst_5 : f32 to vector<16x128xf32>
    %7 = arith.mulf %6, %5 : vector<16x128xf32>
    %cst_6 = arith.constant 4.471500e-02 : f32
    %8 = vector.broadcast %cst_6 : f32 to vector<16x128xf32>
    %9 = arith.mulf %8, %5 : vector<16x128xf32>
    %10 = arith.mulf %9, %5 : vector<16x128xf32>
    %11 = arith.mulf %10, %5 : vector<16x128xf32>
    %12 = arith.addf %5, %11 : vector<16x128xf32>
    %cst_7 = arith.constant 0.797884583 : f32
    %13 = vector.broadcast %cst_7 : f32 to vector<16x128xf32>
    %14 = arith.mulf %13, %12 : vector<16x128xf32>
    %15 = math.tanh %14 : vector<16x128xf32>
    %cst_8 = arith.constant 1.000000e+00 : f32
    %16 = vector.broadcast %cst_8 : f32 to vector<16x128xf32>
    %17 = arith.addf %16, %15 : vector<16x128xf32>
    %18 = arith.mulf %7, %17 : vector<16x128xf32>
    %c0_9 = arith.constant 0 : index
    %c0_10 = arith.constant 0 : index
    %19 = vector.load %arg4[%c0_9, %c0_10] : memref<128x128xf32, #tpu.memory_space<vmem>>, vector<128x128xf32>
    %cst_11 = arith.constant dense<0.000000e+00> : vector<16x128xf32>
    %20 = tpu.matmul %18, %19, %cst_11 {dimension_numbers = #tpu.dot_dimension_numbers<[1], [0], [0], [1], [0, 0, 1, 1], [], []>} : vector<16x128xf32>, vector<128x128xf32>, vector<16x128xf32> -> vector<16x128xf32>
    %c0_12 = arith.constant 0 : index
    %c0_13 = arith.constant 0 : index
    %21 = vector.load %arg5[%c0_12, %c0_13] : memref<1x128xf32, #tpu.memory_space<vmem>>, vector<1x128xf32>
    %22 = vector.broadcast %21 : vector<1x128xf32> to vector<16x128xf32>
    %23 = arith.addf %20, %22 : vector<16x128xf32>
    %c0_14 = arith.constant 0 : index
    %c0_15 = arith.constant 0 : index
    %24 = vector.load %arg6[%c0_14, %c0_15] : memref<16x128xf32, #tpu.memory_space<vmem>>, vector<16x128xf32>
    tpu.vector_store %arg6[%c0_14, %c0_15], %23 {strides = array<i32>} : memref<16x128xf32, #tpu.memory_space<vmem>>, vector<16x128xf32>,
    return
  }
  func.func @transform_0(%arg0: i32) -> (i32, i32) {
    %c0_i32 = arith.constant 0 : i32
    %c0_i32_0 = arith.constant 0 : i32
    return %arg0, %c0_i32 : i32, i32
  }
  func.func @transform_1(%arg0: i32) -> (i32, i32) {
    %c0_i32 = arith.constant 0 : i32
    %c0_i32_0 = arith.constant 0 : i32
    %c0_i32_1 = arith.constant 0 : i32
    return %c0_i32, %c0_i32_0 : i32, i32
  }
  func.func @transform_2(%arg0: i32) -> (i32, i32) {
    %c0_i32 = arith.constant 0 : i32
    %c0_i32_0 = arith.constant 0 : i32
    %c0_i32_1 = arith.constant 0 : i32
    return %c0_i32, %c0_i32_0 : i32, i32
  }
  func.func @transform_3(%arg0: i32) -> (i32, i32) {
    %c0_i32 = arith.constant 0 : i32
    %c0_i32_0 = arith.constant 0 : i32
    %c0_i32_1 = arith.constant 0 : i32
    return %c0_i32, %c0_i32_0 : i32, i32
  }
  func.func @transform_4(%arg0: i32) -> (i32, i32) {
    %c0_i32 = arith.constant 0 : i32
    %c0_i32_0 = arith.constant 0 : i32
    %c0_i32_1 = arith.constant 0 : i32
    return %c0_i32, %c0_i32_0 : i32, i32
  }
  func.func @transform_5(%arg0: i32) -> (i32, i32) {
    %c0_i32 = arith.constant 0 : i32
    %c0_i32_0 = arith.constant 0 : i32
    return %arg0, %c0_i32 : i32, i32
  }
}

</mosaic_0001>

<llo_original>
// kernel: mlp_forward.1
$region0: #{mlp_forward.1}
  #allocation0 [shape = 'u32[]', space=smem, size = 0x4, offset = 0x4, fixed_abs, tag = 'smem constant byte address 0x4 - core index']
  #allocation1 [shape = 'u32[72,128]{1,0:T(1,128)}', space=vmem, size = 0x9000, scoped, tag = 'internal scratch']
  %s0 = inlined_call_operand.vmem [shape: f32[16,128], index: 0, kind: input, shape index: {}]
  %s1 = inlined_call_operand.vmem [shape: f32[128,128], index: 1, kind: input, shape index: {}]
  %s2 = inlined_call_operand.vmem [shape: f32[1,128], index: 2, kind: input, shape index: {}]
  %s3 = inlined_call_operand.vmem [shape: f32[128,128], index: 3, kind: input, shape index: {}]
  %s4 = inlined_call_operand.vmem [shape: f32[1,128], index: 4, kind: input, shape index: {}]
  %s5 = inlined_call_operand.vmem [shape: f32[16,128], index: 5, kind: output, shape index: {}]
  %s6 = sld [smem:[#allocation0]]
  $region30: #{mlp_forward.1} parent=0
    _
  %s8 = ssub.s32 1, %s6
  %s9 = scalar_select 0, %s8, %s6
  // Predicated region
  $region2: #{mlp_forward.1} parent=0 // pred_check
    _
  $region3: #{mlp_forward.1} parent=0 // pred_check_branch
    %11 = sbr.rel (0) target = $region5
  $region4: #{mlp_forward.1} parent=0 // pred_region
    _
  $region5: #{mlp_forward.1} parent=0 // pred_fallthru
    _
  // Predicated region
  $region6: #{mlp_forward.1} parent=0 // pred_check
    _
  $region7: #{mlp_forward.1} parent=0 // pred_check_branch
    %13 = sbr.rel (0) target = $region9
  $region8: #{mlp_forward.1} parent=0 // pred_region
    _
  $region9: #{mlp_forward.1} parent=0 // pred_fallthru
    _
  // Predicated region
  $region10: #{mlp_forward.1} parent=0 // pred_check
    _
  $region11: #{mlp_forward.1} parent=0 // pred_check_branch
    %15 = sbr.rel (0) target = $region13
  $region12: #{mlp_forward.1} parent=0 // pred_region
    _
  $region13: #{mlp_forward.1} parent=0 // pred_fallthru
    _
  // Predicated region
  $region14: #{mlp_forward.1} parent=0 // pred_check
    _
  $region15: #{mlp_forward.1} parent=0 // pred_check_branch
    %17 = sbr.rel (0) target = $region17
  $region16: #{mlp_forward.1} parent=0 // pred_region
    _
  $region17: #{mlp_forward.1} parent=0 // pred_fallthru
    _
  // Predicated region
  $region18: #{mlp_forward.1} parent=0 // pred_check
    _
  $region19: #{mlp_forward.1} parent=0 // pred_check_branch
    %19 = sbr.rel (0) target = $region21
  $region20: #{mlp_forward.1} parent=0 // pred_region
    _
  $region21: #{mlp_forward.1} parent=0 // pred_fallthru
    _
  %v20 = vld [vmem:[%s0] sm:$0xff]
  %v21 = vld [vmem:[%s0 + $0x8] sm:$0xff]
  %v22 = vld [vmem:[%s1] sm:$0xff]
  %v23 = vld [vmem:[%s1 + $0x8] sm:$0xff]
  %v24 = vld [vmem:[%s1 + $0x10] sm:$0xff]
  %v25 = vld [vmem:[%s1 + $0x18] sm:$0xff]
  %v26 = vld [vmem:[%s1 + $0x20] sm:$0xff]
  %v27 = vld [vmem:[%s1 + $0x28] sm:$0xff]
  %v28 = vld [vmem:[%s1 + $0x30] sm:$0xff]
  %v29 = vld [vmem:[%s1 + $0x38] sm:$0xff]
  %v30 = vld [vmem:[%s1 + $0x40] sm:$0xff]
  %v31 = vld [vmem:[%s1 + $0x48] sm:$0xff]
  %v32 = vld [vmem:[%s1 + $0x50] sm:$0xff]
  %v33 = vld [vmem:[%s1 + $0x58] sm:$0xff]
  %v34 = vld [vmem:[%s1 + $0x60] sm:$0xff]
  %v35 = vld [vmem:[%s1 + $0x68] sm:$0xff]
  %v36 = vld [vmem:[%s1 + $0x70] sm:$0xff]
  %v37 = vld [vmem:[%s1 + $0x78] sm:$0xff]
  %v38 = vld [vmem:[%s2] sm:$0x1]
  %v40 = vperm.slane %v38, 0
  %42 = vmatpush.msra.mxu0 %v37
  %43 = vmatpush.msra.mxu0 %v36
  %44 = vmatpush.msra.mxu0 %v35
  %45 = vmatpush.msra.mxu0 %v34
  %46 = vmatpush.msra.mxu0 %v33
  %47 = vmatpush.msra.mxu0 %v32
  %48 = vmatpush.msra.mxu0 %v31
  %49 = vmatpush.msra.mxu0 %v30
  %50 = vmatpush.msra.mxu0 %v29
  %51 = vmatpush.msra.mxu0 %v28
  %52 = vmatpush.msra.mxu0 %v27
  %53 = vmatpush.msra.mxu0 %v26
  %54 = vmatpush.msra.mxu0 %v25
  %55 = vmatpush.msra.mxu0 %v24
  %56 = vmatpush.msra.mxu0 %v23
  %57 = vmatpush.msra.mxu0 %v22
  %58 = vmatmul.f32.gmra.mxu0 %v20
  %v59 = vpop.f32.mrf.mxu0
  %v60 = vadd.f32 %v40, %v59
  %61 = vmatmul.f32.gmra.mxu0 %v21
  %v62 = vpop.f32.mrf.mxu0
  %v63 = vadd.f32 %v40, %v62
  %64 = vdwg.mxu0
  %v65 = vmul.f32 %v60, 0.5
  %v66 = vmul.f32 %v63, 0.5
  %v67 = vmul.f32 %v60, 0.044715
  %v68 = vmul.f32 %v63, 0.044715
  %v69 = vmul.f32 %v67, %v60
  %v70 = vmul.f32 %v68, %v63
  %v71 = vmul.f32 %v69, %v60
  %v72 = vmul.f32 %v70, %v63
  %v73 = vadd.f32 %v60, %v71
  %v74 = vadd.f32 %v63, %v72
  %v75 = vmul.f32 %v73, 0.7978846
  %v76 = vmul.f32 %v74, 0.7978846
  %v77 = vtanh.pop %v75
  %v78 = vtanh.pop %v76
  %v79 = vadd.f32 %v77, 1.0
  %v80 = vadd.f32 %v78, 1.0
  %v81 = vmul.f32 %v65, %v79
  %v82 = vmul.f32 %v66, %v80
  %v83 = vld [vmem:[%s3] sm:$0xff]
  %v84 = vld [vmem:[%s3 + $0x8] sm:$0xff]
  %v85 = vld [vmem:[%s3 + $0x10] sm:$0xff]
  %v86 = vld [vmem:[%s3 + $0x18] sm:$0xff]
  %v87 = vld [vmem:[%s3 + $0x20] sm:$0xff]
  %v88 = vld [vmem:[%s3 + $0x28] sm:$0xff]
  %v89 = vld [vmem:[%s3 + $0x30] sm:$0xff]
  %v90 = vld [vmem:[%s3 + $0x38] sm:$0xff]
  %v91 = vld [vmem:[%s3 + $0x40] sm:$0xff]
  %v92 = vld [vmem:[%s3 + $0x48] sm:$0xff]
  %v93 = vld [vmem:[%s3 + $0x50] sm:$0xff]
  %v94 = vld [vmem:[%s3 + $0x58] sm:$0xff]
  %v95 = vld [vmem:[%s3 + $0x60] sm:$0xff]
  %v96 = vld [vmem:[%s3 + $0x68] sm:$0xff]
  %v97 = vld [vmem:[%s3 + $0x70] sm:$0xff]
  %v98 = vld [vmem:[%s3 + $0x78] sm:$0xff]
  %v99 = vld [vmem:[%s4] sm:$0x1]
  %v101 = vperm.slane %v99, 0
  %103 = vmatpush.msra.mxu0 %v98
  %104 = vmatpush.msra.mxu0 %v97
  %105 = vmatpush.msra.mxu0 %v96
  %106 = vmatpush.msra.mxu0 %v95
  %107 = vmatpush.msra.mxu0 %v94
  %108 = vmatpush.msra.mxu0 %v93
  %109 = vmatpush.msra.mxu0 %v92
  %110 = vmatpush.msra.mxu0 %v91
  %111 = vmatpush.msra.mxu0 %v90
  %112 = vmatpush.msra.mxu0 %v89
  %113 = vmatpush.msra.mxu0 %v88
  %114 = vmatpush.msra.mxu0 %v87
  %115 = vmatpush.msra.mxu0 %v86
  %116 = vmatpush.msra.mxu0 %v85
  %117 = vmatpush.msra.mxu0 %v84
  %118 = vmatpush.msra.mxu0 %v83
  %119 = vmatmul.f32.gmra.mxu0 %v81
  %v120 = vpop.f32.mrf.mxu0
  %v121 = vadd.f32 %v101, %v120
  %122 = vmatmul.f32.gmra.mxu0 %v82
  %v123 = vpop.f32.mrf.mxu0
  %v124 = vadd.f32 %v101, %v123
  %125 = vdwg.mxu0
  %126 = vst [vmem:[%s5] sm:$0xff] %v121
  %127 = vst [vmem:[%s5 + $0x8] sm:$0xff] %v124
  // Predicated region
  $region22: #{mlp_forward.1} parent=0 // pred_check
    _
  $region23: #{mlp_forward.1} parent=0 // pred_check_branch
    %129 = sbr.rel (0) target = $region25
  $region24: #{mlp_forward.1} parent=0 // pred_region
    _
  $region25: #{mlp_forward.1} parent=0 // pred_fallthru
    _
  // Predicated region
  $region26: #{mlp_forward.1} parent=0 // pred_check
    _
  $region27: #{mlp_forward.1} parent=0 // pred_check_branch
    %131 = sbr.rel (0) target = $region29
  $region28: #{mlp_forward.1} parent=0 // pred_region
    _
  $region29: #{mlp_forward.1} parent=0 // pred_fallthru
    _

</llo_original>
